<compile_context>
chip_gen: v6e
topology: v6e:2x2x1
jax: 0.10.0
libtpu: 0.0.40
codegen_flags: <defaults>
</compile_context>

<pallas_src>
import functools

import jax
import jax.numpy as jnp
from jax import lax
from jax.experimental import pallas as pl
from jax.experimental.pallas import tpu as pltpu

EPSILON = 1e-5
PIXEL_MIN_VALUE = 1.0 / 255.0
BN_EPS = 1e-5
NEG_SLOPE = 0.01  # nn.LeakyReLU default
_VMEM_LIMIT = 32 * 1024 * 1024


def _leaky(x):
    return jnp.where(x >= 0, x, NEG_SLOPE * x)


def _for_each_chunk(process, total, chunk):
    """Run process(off, size) over [0, total) in `chunk`-sized lane pieces.

    `total` and `chunk` are Python ints: short trip counts unroll statically,
    long ones use an in-kernel pl.loop; a non-multiple tail becomes a static
    epilogue call, so all slices have static sizes and no masking is needed.
    """
    n_full = total // chunk
    rem = total - n_full * chunk
    if n_full <= 4:
        for i in range(n_full):
            process(i * chunk, chunk)
    else:
        aligned = (chunk % 128 == 0)

        @pl.loop(0, n_full)
        def _(i):
            off = i * chunk
            if aligned:
                off = pl.multiple_of(off, 128)
            process(off, chunk)

    if rem:
        process(n_full * chunk, rem)


def _project_chunk(x_ref, off, size, w0b, b0, ws):
    """OD transform + presep 1x1 conv + LeakyReLU + grouped 1x1 conv + LeakyReLU
    for one pixel chunk.

    Returns a list of S arrays, each (G, size) float32: the capsule responses
    for one stain.  The two real matmuls run on the MXU with bf16 operands and
    f32 accumulation; all elementwise math stays f32 (v5e has no bf16 VPU/EUP).
    """
    xc = x_ref[:, pl.ds(off, size)].astype(jnp.float32)               # (3, size)
    od = -jnp.log(xc + PIXEL_MIN_VALUE)
    h0 = _leaky(jnp.dot(w0b, od.astype(jnp.bfloat16),
                        preferred_element_type=jnp.float32) + b0)     # (G*W, size)
    h0b = h0.astype(jnp.bfloat16)
    return [_leaky(jnp.dot(w_s, h0b, preferred_element_type=jnp.float32))
            for w_s in ws]                                            # S x (G, size)


# ---------------------------------------------------------------------------
# Pass 1: sparsity routing.  grid = (B, routing_iter, pixel_tiles).
# ---------------------------------------------------------------------------
def _routing_kernel(x_ref, w0_ref, b0_ref, ws_ref, c_ref,
                    b_acc, pix_acc, sq_acc, l1_acc, c_col,
                    *, group_num, stain_type, total_pixels, chunk):
    G, S = group_num, stain_type
    r = pl.program_id(1)
    p = pl.program_id(2)
    n_t = pl.num_programs(2)
    TP = x_ref.shape[1]

    sqrt_s = float(S) ** 0.5
    sqrt_p = float(total_pixels) ** 0.5
    inv_den_s = 1.0 / (sqrt_s - 1.0)
    inv_den_p = 1.0 / (sqrt_p - 1.0)

    # per-image routing state
    @pl.when((r == 0) & (p == 0))
    def _():
        b_acc[...] = jnp.zeros_like(b_acc)
        c_col[...] = jnp.zeros_like(c_col)

    # per-routing-iteration statistic accumulators
    @pl.when(p == 0)
    def _():
        pix_acc[...] = jnp.zeros_like(pix_acc)
        sq_acc[...] = jnp.zeros_like(sq_acc)
        l1_acc[...] = jnp.zeros_like(l1_acc)

    # tiny loop invariants, hoisted out of the chunk loop
    w0b = w0_ref[...]
    b0 = b0_ref[...]
    ws = [ws_ref[s] for s in range(S)]
    c = c_col[...]                      # (G, 1); zero on routing iteration 0 -> s == u

    def process(off, size):
        u = _project_chunk(x_ref, off, size, w0b, b0, ws)
        # routing state per stain: broadcast_g(sum_g c_g * u_s) + u_s.
        # Shared temporaries v^2, |v| feed both sparsity statistics.
        gl2 = None
        gl1 = None
        for s in range(S):
            pooled = jnp.sum(c * u[s], axis=0, keepdims=True)          # (1, size)
            v = pooled + u[s] + EPSILON                                # (G, size)
            v2 = v * v
            av = jnp.abs(v)
            sq_acc[:, s:s + 1] += jnp.sum(v2, axis=1, keepdims=True)   # (G, 1)
            l1_acc[:, s:s + 1] += jnp.sum(av, axis=1, keepdims=True)
            gl2 = v2 if gl2 is None else gl2 + v2
            gl1 = av if gl1 is None else gl1 + av
        # pixel sparsity: per-pixel L1/L2 over stains within each group (EUP divide)
        inv_l2 = pl.reciprocal(jnp.sqrt(gl2) + EPSILON, approx=True)
        spp = (sqrt_s - gl1 * inv_l2) * inv_den_s                       # (G, size)
        pix_acc[...] += jnp.sum(spp, axis=1, keepdims=True)             # (G, 1)

    _for_each_chunk(process, TP, chunk)

    # fold this routing iteration into the logits b and refresh c at the last tile
    @pl.when(p == n_t - 1)
    def _():
        pix = pix_acc[...] * (1.0 / float(total_pixels))                # mean over P
        l2c = jnp.sqrt(sq_acc[...]) + EPSILON                           # (G, S)
        spc = (sqrt_p - l1_acc[...] / l2c) * inv_den_p
        chan = jnp.sum(spc, axis=1, keepdims=True) * (1.0 / float(S))   # (G, 1)
        b_new = b_acc[...] + pix + chan
        b_acc[...] = b_new
        m = jnp.max(b_new, axis=0, keepdims=True)
        e = jnp.exp(b_new - m)
        c_new = e / jnp.sum(e, axis=0, keepdims=True)                   # softmax over groups
        c_col[...] = c_new
        c_ref[...] = c_new     # only the value from the final iteration survives


# ---------------------------------------------------------------------------
# Pass 2: capsule combine + per-image BN moments (reconstruction activation
# never leaves VMEM).  grid = (B, pixel_tiles).
# ---------------------------------------------------------------------------
def _apply_kernel(x_ref, c_ref, w0_ref, b0_ref, ws_ref, wre_ref, bre_ref,
                  out_ref, rsum_ref, rsq_ref, *, stain_type, chunk):
    S = stain_type
    p = pl.program_id(1)
    TP = x_ref.shape[1]

    @pl.when(p == 0)
    def _():
        rsum_ref[...] = jnp.zeros_like(rsum_ref)
        rsq_ref[...] = jnp.zeros_like(rsq_ref)

    w0b = w0_ref[...]
    b0 = b0_ref[...]
    ws = [ws_ref[s] for s in range(S)]
    c = c_ref[...]                                         # (G, 1)
    wre_cols = [wre_ref[:, s:s + 1] for s in range(S)]     # S x (3, 1)
    bre = bre_ref[...]                                     # (3, 1)

    def process(off, size):
        u = _project_chunk(x_ref, off, size, w0b, b0, ws)
        outs = [jnp.sum(c * u[s], axis=0, keepdims=True) for s in range(S)]
        out_ref[:, pl.ds(off, size)] = jnp.concatenate(outs, axis=0)    # (S, size)
        # reconstruction 1x1 conv stays in-register; only its per-image
        # first/second moments leave the kernel (for the BatchNorm stats).
        rpre = bre
        for s in range(S):
            rpre = rpre + wre_cols[s] * outs[s]                         # (3, size)
        rsum_ref[...] += jnp.sum(rpre, axis=1, keepdims=True)           # (3, 1)
        rsq_ref[...] += jnp.sum(rpre * rpre, axis=1, keepdims=True)

    _for_each_chunk(process, TP, chunk)


# ---------------------------------------------------------------------------
# Pass 3: BN-folded reconstruction conv + LeakyReLU + exp(-.), reading the
# combined capsule output directly.  grid = (B, pixel_tiles).
# ---------------------------------------------------------------------------
def _recon_kernel(o_ref, wf_ref, bf_ref, re_ref, *, stain_type, chunk):
    S = stain_type
    TP = o_ref.shape[1]
    wf_cols = [wf_ref[:, s:s + 1] for s in range(S)]   # BN-folded conv weight cols
    bf = bf_ref[...]                                   # BN-folded conv bias (3, 1)

    def process(off, size):
        y = bf
        for s in range(S):
            y = y + wf_cols[s] * o_ref[s:s + 1, pl.ds(off, size)]       # (3, size)
        re_ref[:, pl.ds(off, size)] = jnp.exp(-_leaky(y))

    _for_each_chunk(process, TP, chunk)


# ---------------------------------------------------------------------------
# Wrapper
# ---------------------------------------------------------------------------
def _pick_pixel_tile(P, target):
    """Largest multiple of 128 that divides P and is <= target (else whole P)."""
    if P <= target:
        return P
    t = (min(target, P) // 128) * 128
    while t >= 128:
        if P % t == 0:
            return t
        t -= 128
    # TODO(synk): pixel counts with no multiple-of-128 divisor fall back to a
    # single whole-image tile; the in-kernel sub-chunking keeps vreg/VMEM
    # pressure bounded, but truly huge such images would need a masked ragged
    # last grid tile to bound the raw x/out DMA tiles as well.
    return P


def _per_stain_weights(w1, group_num, stain_type, group_width):
    """Grouped 1x1 conv -> S per-stain block weights, each (G, G*W)."""
    G, S, Wd = group_num, stain_type, group_width
    w1g = w1.reshape(G, S, Wd)
    rows = []
    for s in range(S):
        rows.append(jax.scipy.linalg.block_diag(
            *[w1g[g, s][None, :] for g in range(G)]))
    return jnp.stack(rows, axis=0)            # (S, G, G*Wd)


def stain_std_capsule_forward(x, params, *, routing_iter=3, stain_type=2,
                              group_num=5, group_width=3, pixel_tile=32768,
                              lane_chunk=512):
    """x: (B, 3, H, W) float32 NCHW. Returns (output (B,S,H,W), re_image (B,3,H,W))."""
    B, C, H, W = x.shape
    assert C == 3
    P = H * W
    G, S, Wd = group_num, stain_type, group_width
    GW = G * Wd

    w0 = params["w0"]
    b0 = params["b0"]
    wre = params["wre"]
    bre = params["bre"]
    w0_bf = w0.astype(jnp.bfloat16)
    ws_bf = _per_stain_weights(params["w1"], G, S, Wd).astype(jnp.bfloat16)

    TP = _pick_pixel_tile(P, pixel_tile)
    T = P // TP
    CH = min(lane_chunk, TP)

    # x is re-read routing_iter + 1 times; carry it in HBM as bf16 to halve
    # that traffic (the OD transform and all elementwise math stay f32 in-kernel).
    x3 = x.reshape(B, 3, P).astype(jnp.bfloat16)

    # ---- pass 1: sparsity routing -> per-image per-group coefficients c ----
    c_arr = pl.pallas_call(
        functools.partial(_routing_kernel, group_num=G, stain_type=S,
                          total_pixels=P, chunk=CH),
        out_shape=jax.ShapeDtypeStruct((B, G, 1), jnp.float32),
        grid=(B, routing_iter, T),
        in_specs=[
            pl.BlockSpec((None, 3, TP), lambda b, r, p: (b, 0, p)),   # x tile (bf16)
            pl.BlockSpec((GW, 3), lambda b, r, p: (0, 0)),            # w0 (bf16)
            pl.BlockSpec((GW, 1), lambda b, r, p: (0, 0)),            # b0 (f32)
            pl.BlockSpec((S, G, GW), lambda b, r, p: (0, 0, 0)),      # per-stain w1 (bf16)
        ],
        out_specs=pl.BlockSpec((None, G, 1), lambda b, r, p: (b, 0, 0)),
        scratch_shapes=[
            pltpu.VMEM((G, 1), jnp.float32),    # routing logits b
            pltpu.VMEM((G, 1), jnp.float32),    # pixel-sparsity accumulator
            pltpu.VMEM((G, S), jnp.float32),    # sum of v^2 over pixels per (g, s)
            pltpu.VMEM((G, S), jnp.float32),    # sum of |v| over pixels per (g, s)
            pltpu.VMEM((G, 1), jnp.float32),    # current routing coefficients c
        ],
        compiler_params=pltpu.CompilerParams(
            dimension_semantics=("parallel", "arbitrary", "arbitrary"),
            vmem_limit_bytes=_VMEM_LIMIT),
    )(x3, w0_bf, b0, ws_bf)

    # ---- pass 2: combine + per-image BN moments (no rpre HBM round-trip) ----
    out, rsum, rsq = pl.pallas_call(
        functools.partial(_apply_kernel, stain_type=S, chunk=CH),
        out_shape=(jax.ShapeDtypeStruct((B, S, P), jnp.float32),
                   jax.ShapeDtypeStruct((B, 3, 1), jnp.float32),
                   jax.ShapeDtypeStruct((B, 3, 1), jnp.float32)),
        grid=(B, T),
        in_specs=[
            pl.BlockSpec((None, 3, TP), lambda b, p: (b, 0, p)),
            pl.BlockSpec((None, G, 1), lambda b, p: (b, 0, 0)),
            pl.BlockSpec((GW, 3), lambda b, p: (0, 0)),
            pl.BlockSpec((GW, 1), lambda b, p: (0, 0)),
            pl.BlockSpec((S, G, GW), lambda b, p: (0, 0, 0)),
            pl.BlockSpec((3, S), lambda b, p: (0, 0)),
            pl.BlockSpec((3, 1), lambda b, p: (0, 0)),
        ],
        out_specs=(pl.BlockSpec((None, S, TP), lambda b, p: (b, 0, p)),
                   pl.BlockSpec((None, 3, 1), lambda b, p: (b, 0, 0)),
                   pl.BlockSpec((None, 3, 1), lambda b, p: (b, 0, 0))),
        compiler_params=pltpu.CompilerParams(
            dimension_semantics=("parallel", "arbitrary"),
            vmem_limit_bytes=_VMEM_LIMIT),
    )(x3, c_arr, w0_bf, b0, ws_bf, wre, bre)

    # ---- tiny XLA glue: batch BN stats (train mode, gamma=1 / beta=0),
    #      folded into the reconstruction conv for pass 3 ----
    n = float(B * P)
    mean = jnp.sum(rsum[:, :, 0], axis=0) / n                 # (3,)
    ex2 = jnp.sum(rsq[:, :, 0], axis=0) / n
    var = ex2 - mean * mean                                   # biased batch variance
    inv_std = lax.rsqrt(var + BN_EPS)
    w_fold = inv_std[:, None] * wre                           # (3, S)
    b_fold = (inv_std * (bre[:, 0] - mean))[:, None]          # (3, 1)

    # ---- pass 3: BN-folded reconstruction conv + LeakyReLU + exp(-.) ----
    re = pl.pallas_call(
        functools.partial(_recon_kernel, stain_type=S, chunk=CH),
        out_shape=jax.ShapeDtypeStruct((B, 3, P), jnp.float32),
        grid=(B, T),
        in_specs=[pl.BlockSpec((None, S, TP), lambda b, p: (b, 0, p)),
                  pl.BlockSpec((3, S), lambda b, p: (0, 0)),
                  pl.BlockSpec((3, 1), lambda b, p: (0, 0))],
        out_specs=pl.BlockSpec((None, 3, TP), lambda b, p: (b, 0, p)),
        compiler_params=pltpu.CompilerParams(
            dimension_semantics=("parallel", "parallel"),
            vmem_limit_bytes=_VMEM_LIMIT),
    )(out, w_fold, b_fold)

    return out.reshape(B, S, H, W), re.reshape(B, 3, H, W)


# ---------------------------------------------------------------------------
# Pure-JAX reference (mirrors the PyTorch module) for a correctness check.
# ---------------------------------------------------------------------------
def _ref_forward(x, params, *, routing_iter=3, stain_type=2, group_num=5,
                 group_width=3):
    G, S, Wd = group_num, stain_type, group_width
    w0, b0, w1, wre, bre = (params["w0"], params["b0"], params["w1"],
                            params["wre"], params["bre"])
    B, _, H, W = x.shape
    od = -jnp.log(x + PIXEL_MIN_VALUE)
    h0 = _leaky(jnp.einsum('oc,bchw->bohw', w0, od) + b0.reshape(1, -1, 1, 1))
    h0g = h0.reshape(B, G, Wd, H, W)
    w1g = w1.reshape(G, S, Wd)
    x5 = _leaky(jnp.einsum('gsc,bgchw->bgshw', w1g, h0g))   # (B, G, S, H, W)

    def pixel_sparsity(s):
        v = s + EPSILON
        l2 = jnp.sqrt(jnp.sum(v * v, axis=2, keepdims=True)) + EPSILON
        l1 = jnp.sum(jnp.abs(v), axis=2, keepdims=True)
        sq = S ** 0.5
        sp = (sq - l1 / l2) / (sq - 1.0)
        return jnp.mean(sp, axis=(3, 4), keepdims=True)

    def channel_sparsity(s):
        v = s + EPSILON
        l2 = jnp.sqrt(jnp.sum(v * v, axis=(3, 4), keepdims=True)) + EPSILON
        l1 = jnp.sum(jnp.abs(v), axis=(3, 4), keepdims=True)
        sq = float(s.shape[3] * s.shape[4]) ** 0.5
        sp = (sq - l1 / l2) / (sq - 1.0)
        return jnp.mean(sp, axis=2, keepdims=True)

    u = x5
    s = u
    b = 0.0
    for _ in range(routing_iter - 1):
        b = b + pixel_sparsity(s) + channel_sparsity(s)
        c = jax.nn.softmax(b, axis=1)
        s = jnp.sum(c * u, axis=1, keepdims=True) + u
    b = b + pixel_sparsity(s) + channel_sparsity(s)
    c = jax.nn.softmax(b, axis=1)
    output = jnp.sum(x5 * c, axis=1)                                   # (B, S, H, W)
    r = jnp.einsum('os,bshw->bohw', wre, output) + bre.reshape(1, 3, 1, 1)
    mean = jnp.mean(r, axis=(0, 2, 3), keepdims=True)
    var = jnp.mean((r - mean) ** 2, axis=(0, 2, 3), keepdims=True)
    y = (r - mean) / jnp.sqrt(var + BN_EPS)
    re = jnp.exp(-_leaky(y))
    return output, re


if __name__ == "__main__":
    key = jax.random.PRNGKey(0)
    kx, k0, kb0, k1, kre, kbre = jax.random.split(key, 6)

    B, H, W = 2, 16, 16
    G, S, Wd, R = 5, 2, 3, 3

    x = jax.random.uniform(kx, (B, 3, H, W), dtype=jnp.float32,
                           minval=0.05, maxval=1.0)
    params = {
        "w0": 0.3 * jax.random.normal(k0, (G * Wd, 3), dtype=jnp.float32),
        "b0": 0.1 * jax.random.normal(kb0, (G * Wd, 1), dtype=jnp.float32),
        "w1": 0.3 * jax.random.normal(k1, (G * S, Wd), dtype=jnp.float32),
        "wre": 0.3 * jax.random.normal(kre, (3, S), dtype=jnp.float32),
        "bre": 0.1 * jax.random.normal(kbre, (3, 1), dtype=jnp.float32),
    }

    out, re = stain_std_capsule_forward(x, params, routing_iter=R, stain_type=S,
                                        group_num=G, group_width=Wd)
    out, re = jax.block_until_ready((out, re))

    ref_out, ref_re = _ref_forward(x, params, routing_iter=R, stain_type=S,
                                   group_num=G, group_width=Wd)

    assert out.shape == (B, S, H, W) and re.shape == (B, 3, H, W)
    # bf16 MXU operands (x / projection weights) relax the tolerance slightly
    # versus the all-f32 reference; BatchNorm's 1/std further amplifies that
    # noise in the reconstructed image, hence the marginally looser re bound.
    assert jnp.allclose(out, ref_out, rtol=3e-2, atol=3e-2), (
        "output mismatch, max err %e" % float(jnp.max(jnp.abs(out - ref_out))))
    assert jnp.allclose(re, ref_re, rtol=4e-2, atol=4e-2), (
        "re_image mismatch, max err %e" % float(jnp.max(jnp.abs(re - ref_re))))

    print("KERNEL_OK")
</pallas_src>

<mosaic_0001>
module attributes {stable_mosaic.version = 11 : i64} {
  func.func @_routing_kernel(%arg0: i32, %arg1: i32, %arg2: i32, %arg3: memref<1x3x256xbf16, #tpu.memory_space<vmem>>, %arg4: memref<15x3xbf16, #tpu.memory_space<vmem>>, %arg5: memref<15x1xf32, #tpu.memory_space<vmem>>, %arg6: memref<2x5x15xbf16, #tpu.memory_space<vmem>>, %arg7: memref<1x5x1xf32, #tpu.memory_space<vmem>>, %arg8: memref<5x1xf32, #tpu.memory_space<vmem>>, %arg9: memref<5x1xf32, #tpu.memory_space<vmem>>, %arg10: memref<5x2xf32, #tpu.memory_space<vmem>>, %arg11: memref<5x2xf32, #tpu.memory_space<vmem>>, %arg12: memref<5x1xf32, #tpu.memory_space<vmem>>) attributes {dimension_semantics = [#tpu.dimension_semantics<parallel>, #tpu.dimension_semantics<arbitrary>, #tpu.dimension_semantics<arbitrary>], iteration_bounds = array<i64: 2, 3, 1>, scalar_prefetch = 0 : i64, scratch_operands = 5 : i64, tpu.core_type = #tpu.core_type<tc>, window_params = [{transform_indices = @transform_0, window_bounds = array<i64: 1, 3, 256>}, {pipeline_mode = #tpu.pipeline_mode<synchronous>, transform_indices = @transform_1, window_bounds = array<i64: 15, 3>}, {pipeline_mode = #tpu.pipeline_mode<synchronous>, transform_indices = @transform_2, window_bounds = array<i64: 15, 1>}, {pipeline_mode = #tpu.pipeline_mode<synchronous>, transform_indices = @transform_3, window_bounds = array<i64: 2, 5, 15>}, {transform_indices = @transform_4, window_bounds = array<i64: 1, 5, 1>}]} {
    %c0_i32 = arith.constant 0 : i32
    %0 = arith.cmpi eq, %arg1, %c0_i32 : i32
    %c0_i32_0 = arith.constant 0 : i32
    %1 = arith.cmpi eq, %arg2, %c0_i32_0 : i32
    %2 = arith.andi %0, %1 : i1
    %3 = arith.extui %2 : i1 to i32
    %c0_i32_1 = arith.constant 0 : i32
    %4 = arith.cmpi ne, %3, %c0_i32_1 : i32
    scf.if %4 {
      %cst_61 = arith.constant 0.000000e+00 : f32
      %104 = vector.broadcast %cst_61 : f32 to vector<5x1xf32>
      %c0_62 = arith.constant 0 : index
      %c0_63 = arith.constant 0 : index
      %105 = vector.load %arg8[%c0_62, %c0_63] : memref<5x1xf32, #tpu.memory_space<vmem>>, vector<5x1xf32>
      tpu.vector_store %arg8[%c0_62, %c0_63], %104 {strides = array<i32>} : memref<5x1xf32, #tpu.memory_space<vmem>>, vector<5x1xf32>,
      %cst_64 = arith.constant 0.000000e+00 : f32
      %106 = vector.broadcast %cst_64 : f32 to vector<5x1xf32>
      %c0_65 = arith.constant 0 : index
      %c0_66 = arith.constant 0 : index
      %107 = vector.load %arg12[%c0_65, %c0_66] : memref<5x1xf32, #tpu.memory_space<vmem>>, vector<5x1xf32>
      tpu.vector_store %arg12[%c0_65, %c0_66], %106 {strides = array<i32>} : memref<5x1xf32, #tpu.memory_space<vmem>>, vector<5x1xf32>,
    } else {
    }
    %c0_i32_2 = arith.constant 0 : i32
    %5 = arith.cmpi eq, %arg2, %c0_i32_2 : i32
    %6 = arith.extui %5 : i1 to i32
    %c0_i32_3 = arith.constant 0 : i32
    %7 = arith.cmpi ne, %6, %c0_i32_3 : i32
    scf.if %7 {
      %cst_61 = arith.constant 0.000000e+00 : f32
      %104 = vector.broadcast %cst_61 : f32 to vector<5x1xf32>
      %c0_62 = arith.constant 0 : index
      %c0_63 = arith.constant 0 : index
      %105 = vector.load %arg9[%c0_62, %c0_63] : memref<5x1xf32, #tpu.memory_space<vmem>>, vector<5x1xf32>
      tpu.vector_store %arg9[%c0_62, %c0_63], %104 {strides = array<i32>} : memref<5x1xf32, #tpu.memory_space<vmem>>, vector<5x1xf32>,
      %cst_64 = arith.constant 0.000000e+00 : f32
      %106 = vector.broadcast %cst_64 : f32 to vector<5x2xf32>
      %c0_65 = arith.constant 0 : index
      %c0_66 = arith.constant 0 : index
      %107 = vector.load %arg10[%c0_65, %c0_66] : memref<5x2xf32, #tpu.memory_space<vmem>>, vector<5x2xf32>
      tpu.vector_store %arg10[%c0_65, %c0_66], %106 {strides = array<i32>} : memref<5x2xf32, #tpu.memory_space<vmem>>, vector<5x2xf32>,
      %cst_67 = arith.constant 0.000000e+00 : f32
      %108 = vector.broadcast %cst_67 : f32 to vector<5x2xf32>
      %c0_68 = arith.constant 0 : index
      %c0_69 = arith.constant 0 : index
      %109 = vector.load %arg11[%c0_68, %c0_69] : memref<5x2xf32, #tpu.memory_space<vmem>>, vector<5x2xf32>
      tpu.vector_store %arg11[%c0_68, %c0_69], %108 {strides = array<i32>} : memref<5x2xf32, #tpu.memory_space<vmem>>, vector<5x2xf32>,
    } else {
    }
    %c0 = arith.constant 0 : index
    %c0_4 = arith.constant 0 : index
    %8 = vector.load %arg4[%c0, %c0_4] : memref<15x3xbf16, #tpu.memory_space<vmem>>, vector<15x3xbf16>
    %c0_5 = arith.constant 0 : index
    %c0_6 = arith.constant 0 : index
    %9 = vector.load %arg5[%c0_5, %c0_6] : memref<15x1xf32, #tpu.memory_space<vmem>>, vector<15x1xf32>
    %c0_7 = arith.constant 0 : index
    %c0_8 = arith.constant 0 : index
    %c0_9 = arith.constant 0 : index
    %10 = vector.load %arg6[%c0_7, %c0_8, %c0_9] : memref<2x5x15xbf16, #tpu.memory_space<vmem>>, vector<1x5x15xbf16>
    %11 = vector.shape_cast %10 : vector<1x5x15xbf16> to vector<5x15xbf16>
    %c1 = arith.constant 1 : index
    %c0_10 = arith.constant 0 : index
    %c0_11 = arith.constant 0 : index
    %12 = vector.load %arg6[%c1, %c0_10, %c0_11] : memref<2x5x15xbf16, #tpu.memory_space<vmem>>, vector<1x5x15xbf16>
    %13 = vector.shape_cast %12 : vector<1x5x15xbf16> to vector<5x15xbf16>
    %c0_12 = arith.constant 0 : index
    %c0_13 = arith.constant 0 : index
    %14 = vector.load %arg12[%c0_12, %c0_13] : memref<5x1xf32, #tpu.memory_space<vmem>>, vector<5x1xf32>
    %c0_14 = arith.constant 0 : index
    %c0_15 = arith.constant 0 : index
    %c0_16 = arith.constant 0 : index
    %15 = vector.load %arg3[%c0_14, %c0_15, %c0_16] : memref<1x3x256xbf16, #tpu.memory_space<vmem>>, vector<1x3x256xbf16>
    %16 = vector.shape_cast %15 : vector<1x3x256xbf16> to vector<3x256xbf16>
    %17 = arith.extf %16 : vector<3x256xbf16> to vector<3x256xf32>
    %cst = arith.constant 0.00392156886 : f32
    %18 = vector.broadcast %cst : f32 to vector<3x256xf32>
    %19 = arith.addf %17, %18 : vector<3x256xf32>
    %20 = math.log %19 : vector<3x256xf32>
    %cst_17 = arith.constant 0.000000e+00 : f32
    %21 = vector.broadcast %cst_17 : f32 to vector<3x256xf32>
    %22 = arith.subf %21, %20 : vector<3x256xf32>
    %23 = arith.truncf %22 : vector<3x256xf32> to vector<3x256xbf16>
    %cst_18 = arith.constant dense<0.000000e+00> : vector<15x256xf32>
    %24 = tpu.matmul %8, %23, %cst_18 {dimension_numbers = #tpu.dot_dimension_numbers<[1], [0], [0], [1], [0, 0, 1, 1], [], []>} : vector<15x3xbf16>, vector<3x256xbf16>, vector<15x256xf32> -> vector<15x256xf32>
    %25 = vector.broadcast %9 : vector<15x1xf32> to vector<15x256xf32>
    %26 = arith.addf %24, %25 : vector<15x256xf32>
    %cst_19 = arith.constant 0.000000e+00 : f32
    %27 = vector.broadcast %cst_19 : f32 to vector<15x256xf32>
    %28 = arith.cmpf oge, %26, %27 : vector<15x256xf32>
    %cst_20 = arith.constant 0.00999999977 : f32
    %29 = vector.broadcast %cst_20 : f32 to vector<15x256xf32>
    %30 = arith.mulf %29, %26 : vector<15x256xf32>
    %31 = arith.select %28, %26, %30 : vector<15x256xi1>, vector<15x256xf32>
    %32 = arith.truncf %31 : vector<15x256xf32> to vector<15x256xbf16>
    %cst_21 = arith.constant dense<0.000000e+00> : vector<5x256xf32>
    %33 = tpu.matmul %11, %32, %cst_21 {dimension_numbers = #tpu.dot_dimension_numbers<[1], [0], [0], [1], [0, 0, 1, 1], [], []>} : vector<5x15xbf16>, vector<15x256xbf16>, vector<5x256xf32> -> vector<5x256xf32>
    %cst_22 = arith.constant 0.000000e+00 : f32
    %34 = vector.broadcast %cst_22 : f32 to vector<5x256xf32>
    %35 = arith.cmpf oge, %33, %34 : vector<5x256xf32>
    %cst_23 = arith.constant 0.00999999977 : f32
    %36 = vector.broadcast %cst_23 : f32 to vector<5x256xf32>
    %37 = arith.mulf %36, %33 : vector<5x256xf32>
    %38 = arith.select %35, %33, %37 : vector<5x256xi1>, vector<5x256xf32>
    %cst_24 = arith.constant dense<0.000000e+00> : vector<5x256xf32>
    %39 = tpu.matmul %13, %32, %cst_24 {dimension_numbers = #tpu.dot_dimension_numbers<[1], [0], [0], [1], [0, 0, 1, 1], [], []>} : vector<5x15xbf16>, vector<15x256xbf16>, vector<5x256xf32> -> vector<5x256xf32>
    %cst_25 = arith.constant 0.000000e+00 : f32
    %40 = vector.broadcast %cst_25 : f32 to vector<5x256xf32>
    %41 = arith.cmpf oge, %39, %40 : vector<5x256xf32>
    %cst_26 = arith.constant 0.00999999977 : f32
    %42 = vector.broadcast %cst_26 : f32 to vector<5x256xf32>
    %43 = arith.mulf %42, %39 : vector<5x256xf32>
    %44 = arith.select %41, %39, %43 : vector<5x256xi1>, vector<5x256xf32>
    %45 = vector.broadcast %14 : vector<5x1xf32> to vector<5x256xf32>
    %46 = arith.mulf %45, %38 : vector<5x256xf32>
    %cst_27 = arith.constant dense<0.000000e+00> : vector<256xf32>
    %47 = vector.multi_reduction <add>, %46, %cst_27 [0] : vector<5x256xf32> to vector<256xf32>
    %48 = vector.shape_cast %47 : vector<256xf32> to vector<1x256xf32>
    %49 = vector.broadcast %48 : vector<1x256xf32> to vector<5x256xf32>
    %50 = arith.addf %49, %38 : vector<5x256xf32>
    %cst_28 = arith.constant 9.99999974E-6 : f32
    %51 = vector.broadcast %cst_28 : f32 to vector<5x256xf32>
    %52 = arith.addf %50, %51 : vector<5x256xf32>
    %53 = arith.mulf %52, %52 : vector<5x256xf32>
    %54 = math.absf %52 : vector<5x256xf32>
    %c0_29 = arith.constant 0 : index
    %c0_30 = arith.constant 0 : index
    %55 = vector.load %arg10[%c0_29, %c0_30] : memref<5x2xf32, #tpu.memory_space<vmem>>, vector<5x1xf32>
    %cst_31 = arith.constant dense<0.000000e+00> : vector<5xf32>
    %56 = vector.multi_reduction <add>, %53, %cst_31 [1] : vector<5x256xf32> to vector<5xf32>
    %57 = vector.shape_cast %56 : vector<5xf32> to vector<5x1xf32>
    %58 = arith.addf %55, %57 : vector<5x1xf32>
    %c0_32 = arith.constant 0 : index
    %c0_33 = arith.constant 0 : index
    %59 = vector.load %arg10[%c0_32, %c0_33] : memref<5x2xf32, #tpu.memory_space<vmem>>, vector<5x1xf32>
    tpu.vector_store %arg10[%c0_32, %c0_33], %58 {strides = array<i32>} : memref<5x2xf32, #tpu.memory_space<vmem>>, vector<5x1xf32>,
    %c0_34 = arith.constant 0 : index
    %c0_35 = arith.constant 0 : index
    %60 = vector.load %arg11[%c0_34, %c0_35] : memref<5x2xf32, #tpu.memory_space<vmem>>, vector<5x1xf32>
    %cst_36 = arith.constant dense<0.000000e+00> : vector<5xf32>
    %61 = vector.multi_reduction <add>, %54, %cst_36 [1] : vector<5x256xf32> to vector<5xf32>
    %62 = vector.shape_cast %61 : vector<5xf32> to vector<5x1xf32>
    %63 = arith.addf %60, %62 : vector<5x1xf32>
    %c0_37 = arith.constant 0 : index
    %c0_38 = arith.constant 0 : index
    %64 = vector.load %arg11[%c0_37, %c0_38] : memref<5x2xf32, #tpu.memory_space<vmem>>, vector<5x1xf32>
    tpu.vector_store %arg11[%c0_37, %c0_38], %63 {strides = array<i32>} : memref<5x2xf32, #tpu.memory_space<vmem>>, vector<5x1xf32>,
    %65 = vector.broadcast %14 : vector<5x1xf32> to vector<5x256xf32>
    %66 = arith.mulf %65, %44 : vector<5x256xf32>
    %cst_39 = arith.constant dense<0.000000e+00> : vector<256xf32>
    %67 = vector.multi_reduction <add>, %66, %cst_39 [0] : vector<5x256xf32> to vector<256xf32>
    %68 = vector.shape_cast %67 : vector<256xf32> to vector<1x256xf32>
    %69 = vector.broadcast %68 : vector<1x256xf32> to vector<5x256xf32>
    %70 = arith.addf %69, %44 : vector<5x256xf32>
    %cst_40 = arith.constant 9.99999974E-6 : f32
    %71 = vector.broadcast %cst_40 : f32 to vector<5x256xf32>
    %72 = arith.addf %70, %71 : vector<5x256xf32>
    %73 = arith.mulf %72, %72 : vector<5x256xf32>
    %74 = math.absf %72 : vector<5x256xf32>
    %c0_41 = arith.constant 0 : index
    %c1_42 = arith.constant 1 : index
    %75 = vector.load %arg10[%c0_41, %c1_42] : memref<5x2xf32, #tpu.memory_space<vmem>>, vector<5x1xf32>
    %cst_43 = arith.constant dense<0.000000e+00> : vector<5xf32>
    %76 = vector.multi_reduction <add>, %73, %cst_43 [1] : vector<5x256xf32> to vector<5xf32>
    %77 = vector.shape_cast %76 : vector<5xf32> to vector<5x1xf32>
    %78 = arith.addf %75, %77 : vector<5x1xf32>
    %c0_44 = arith.constant 0 : index
    %c1_45 = arith.constant 1 : index
    %79 = vector.load %arg10[%c0_44, %c1_45] : memref<5x2xf32, #tpu.memory_space<vmem>>, vector<5x1xf32>
    tpu.vector_store %arg10[%c0_44, %c1_45], %78 {strides = array<i32>} : memref<5x2xf32, #tpu.memory_space<vmem>>, vector<5x1xf32>,
    %c0_46 = arith.constant 0 : index
    %c1_47 = arith.constant 1 : index
    %80 = vector.load %arg11[%c0_46, %c1_47] : memref<5x2xf32, #tpu.memory_space<vmem>>, vector<5x1xf32>
    %cst_48 = arith.constant dense<0.000000e+00> : vector<5xf32>
    %81 = vector.multi_reduction <add>, %74, %cst_48 [1] : vector<5x256xf32> to vector<5xf32>
    %82 = vector.shape_cast %81 : vector<5xf32> to vector<5x1xf32>
    %83 = arith.addf %80, %82 : vector<5x1xf32>
    %c0_49 = arith.constant 0 : index
    %c1_50 = arith.constant 1 : index
    %84 = vector.load %arg11[%c0_49, %c1_50] : memref<5x2xf32, #tpu.memory_space<vmem>>, vector<5x1xf32>
    tpu.vector_store %arg11[%c0_49, %c1_50], %83 {strides = array<i32>} : memref<5x2xf32, #tpu.memory_space<vmem>>, vector<5x1xf32>,
    %85 = arith.addf %53, %73 : vector<5x256xf32>
    %86 = arith.addf %54, %74 : vector<5x256xf32>
    %87 = math.sqrt %85 : vector<5x256xf32>
    %cst_51 = arith.constant 9.99999974E-6 : f32
    %88 = vector.broadcast %cst_51 : f32 to vector<5x256xf32>
    %89 = arith.addf %87, %88 : vector<5x256xf32>
    %90 = tpu.reciprocal %89 {approx = true} : vector<5x256xf32> -> vector<5x256xf32>
    %91 = arith.mulf %86, %90 : vector<5x256xf32>
    %cst_52 = arith.constant 1.41421354 : f32
    %92 = vector.broadcast %cst_52 : f32 to vector<5x256xf32>
    %93 = arith.subf %92, %91 : vector<5x256xf32>
    %cst_53 = arith.constant 2.41421366 : f32
    %94 = vector.broadcast %cst_53 : f32 to vector<5x256xf32>
    %95 = arith.mulf %93, %94 : vector<5x256xf32>
    %c0_54 = arith.constant 0 : index
    %c0_55 = arith.constant 0 : index
    %96 = vector.load %arg9[%c0_54, %c0_55] : memref<5x1xf32, #tpu.memory_space<vmem>>, vector<5x1xf32>
    %cst_56 = arith.constant dense<0.000000e+00> : vector<5xf32>
    %97 = vector.multi_reduction <add>, %95, %cst_56 [1] : vector<5x256xf32> to vector<5xf32>
    %98 = vector.shape_cast %97 : vector<5xf32> to vector<5x1xf32>
    %99 = arith.addf %96, %98 : vector<5x1xf32>
    %c0_57 = arith.constant 0 : index
    %c0_58 = arith.constant 0 : index
    %100 = vector.load %arg9[%c0_57, %c0_58] : memref<5x1xf32, #tpu.memory_space<vmem>>, vector<5x1xf32>
    tpu.vector_store %arg9[%c0_57, %c0_58], %99 {strides = array<i32>} : memref<5x1xf32, #tpu.memory_space<vmem>>, vector<5x1xf32>,
    %c0_i32_59 = arith.constant 0 : i32
    %101 = arith.cmpi eq, %arg2, %c0_i32_59 : i32
    %102 = arith.extui %101 : i1 to i32
    %c0_i32_60 = arith.constant 0 : i32
    %103 = arith.cmpi ne, %102, %c0_i32_60 : i32
    scf.if %103 {
      %c0_61 = arith.constant 0 : index
      %c0_62 = arith.constant 0 : index
      %104 = vector.load %arg9[%c0_61, %c0_62] : memref<5x1xf32, #tpu.memory_space<vmem>>, vector<5x1xf32>
      %cst_63 = arith.constant 3.906250e-03 : f32
      %105 = vector.broadcast %cst_63 : f32 to vector<5x1xf32>
      %106 = arith.mulf %104, %105 : vector<5x1xf32>
      %c0_64 = arith.constant 0 : index
      %c0_65 = arith.constant 0 : index
      %107 = vector.load %arg10[%c0_64, %c0_65] : memref<5x2xf32, #tpu.memory_space<vmem>>, vector<5x2xf32>
      %108 = math.sqrt %107 : vector<5x2xf32>
      %cst_66 = arith.constant 9.99999974E-6 : f32
      %109 = vector.broadcast %cst_66 : f32 to vector<5x2xf32>
      %110 = arith.addf %108, %109 : vector<5x2xf32>
      %c0_67 = arith.constant 0 : index
      %c0_68 = arith.constant 0 : index
      %111 = vector.load %arg11[%c0_67, %c0_68] : memref<5x2xf32, #tpu.memory_space<vmem>>, vector<5x2xf32>
      %112 = arith.divf %111, %110 : vector<5x2xf32>
      %cst_69 = arith.constant 1.600000e+01 : f32
      %113 = vector.broadcast %cst_69 : f32 to vector<5x2xf32>
      %114 = arith.subf %113, %112 : vector<5x2xf32>
      %cst_70 = arith.constant 0.0666666701 : f32
      %115 = vector.broadcast %cst_70 : f32 to vector<5x2xf32>
      %116 = arith.mulf %114, %115 : vector<5x2xf32>
      %cst_71 = arith.constant dense<0.000000e+00> : vector<5xf32>
      %117 = vector.multi_reduction <add>, %116, %cst_71 [1] : vector<5x2xf32> to vector<5xf32>
      %118 = vector.shape_cast %117 : vector<5xf32> to vector<5x1xf32>
      %cst_72 = arith.constant 5.000000e-01 : f32
      %119 = vector.broadcast %cst_72 : f32 to vector<5x1xf32>
      %120 = arith.mulf %118, %119 : vector<5x1xf32>
      %c0_73 = arith.constant 0 : index
      %c0_74 = arith.constant 0 : index
      %121 = vector.load %arg8[%c0_73, %c0_74] : memref<5x1xf32, #tpu.memory_space<vmem>>, vector<5x1xf32>
      %122 = arith.addf %121, %106 : vector<5x1xf32>
      %123 = arith.addf %122, %120 : vector<5x1xf32>
      %c0_75 = arith.constant 0 : index
      %c0_76 = arith.constant 0 : index
      %124 = vector.load %arg8[%c0_75, %c0_76] : memref<5x1xf32, #tpu.memory_space<vmem>>, vector<5x1xf32>
      tpu.vector_store %arg8[%c0_75, %c0_76], %123 {strides = array<i32>} : memref<5x1xf32, #tpu.memory_space<vmem>>, vector<5x1xf32>,
      %cst_77 = arith.constant dense<0xFF800000> : vector<1xf32>
      %125 = vector.multi_reduction <maximumf>, %123, %cst_77 [0] : vector<5x1xf32> to vector<1xf32>
      %126 = vector.shape_cast %125 : vector<1xf32> to vector<1x1xf32>
      %127 = vector.broadcast %126 : vector<1x1xf32> to vector<5x1xf32>
      %128 = arith.subf %123, %127 : vector<5x1xf32>
      %129 = math.exp %128 : vector<5x1xf32>
      %cst_78 = arith.constant dense<0.000000e+00> : vector<1xf32>
      %130 = vector.multi_reduction <add>, %129, %cst_78 [0] : vector<5x1xf32> to vector<1xf32>
      %131 = vector.shape_cast %130 : vector<1xf32> to vector<1x1xf32>
      %132 = vector.broadcast %131 : vector<1x1xf32> to vector<5x1xf32>
      %133 = arith.divf %129, %132 : vector<5x1xf32>
      %c0_79 = arith.constant 0 : index
      %c0_80 = arith.constant 0 : index
      %134 = vector.load %arg12[%c0_79, %c0_80] : memref<5x1xf32, #tpu.memory_space<vmem>>, vector<5x1xf32>
      tpu.vector_store %arg12[%c0_79, %c0_80], %133 {strides = array<i32>} : memref<5x1xf32, #tpu.memory_space<vmem>>, vector<5x1xf32>,
      %c0_81 = arith.constant 0 : index
      %c0_82 = arith.constant 0 : index
      %c0_83 = arith.constant 0 : index
      %135 = vector.load %arg7[%c0_81, %c0_82, %c0_83] : memref<1x5x1xf32, #tpu.memory_space<vmem>>, vector<1x5x1xf32>
      %136 = vector.shape_cast %135 : vector<1x5x1xf32> to vector<5x1xf32>
      %137 = vector.shape_cast %133 : vector<5x1xf32> to vector<1x5x1xf32>
      tpu.vector_store %arg7[%c0_81, %c0_82, %c0_83], %137 {strides = array<i32>} : memref<1x5x1xf32, #tpu.memory_space<vmem>>, vector<1x5x1xf32>,
    } else {
    }
    return
  }
  func.func @transform_0(%arg0: i32, %arg1: i32, %arg2: i32) -> (i32, i32, i32) {
    %c0_i32 = arith.constant 0 : i32
    %c0_i32_0 = arith.constant 0 : i32
    return %arg0, %c0_i32, %arg2 : i32, i32, i32
  }
  func.func @transform_1(%arg0: i32, %arg1: i32, %arg2: i32) -> (i32, i32) {
    %c0_i32 = arith.constant 0 : i32
    %c0_i32_0 = arith.constant 0 : i32
    %c0_i32_1 = arith.constant 0 : i32
    return %c0_i32, %c0_i32_0 : i32, i32
  }
  func.func @transform_2(%arg0: i32, %arg1: i32, %arg2: i32) -> (i32, i32) {
    %c0_i32 = arith.constant 0 : i32
    %c0_i32_0 = arith.constant 0 : i32
    %c0_i32_1 = arith.constant 0 : i32
    return %c0_i32, %c0_i32_0 : i32, i32
  }
  func.func @transform_3(%arg0: i32, %arg1: i32, %arg2: i32) -> (i32, i32, i32) {
    %c0_i32 = arith.constant 0 : i32
    %c0_i32_0 = arith.constant 0 : i32
    %c0_i32_1 = arith.constant 0 : i32
    %c0_i32_2 = arith.constant 0 : i32
    return %c0_i32, %c0_i32_0, %c0_i32_1 : i32, i32, i32
  }
  func.func @transform_4(%arg0: i32, %arg1: i32, %arg2: i32) -> (i32, i32, i32) {
    %c0_i32 = arith.constant 0 : i32
    %c0_i32_0 = arith.constant 0 : i32
    %c0_i32_1 = arith.constant 0 : i32
    return %arg0, %c0_i32, %c0_i32_0 : i32, i32, i32
  }
}

</mosaic_0001>

<llo_original>
// kernel: tpu_custom_call.1
$region0: #{tpu_custom_call.1}
  #allocation0 [shape = 'u32[]', space=smem, size = 0x4, offset = 0x4, fixed_abs, tag = 'smem constant byte address 0x4 - core index']
  #allocation1 [shape = 'u32[144,128]{1,0:T(1,128)}', space=vmem, size = 0x12000, scoped, tag = 'internal scratch']
  #allocation2 [shape = 'f32[5,1]{1,0:T(8,128)}', space=vmem, size = 0x1000, scoped, tag = 'scratch operand']
  #allocation3 [shape = 'f32[5,1]{1,0:T(8,128)}', space=vmem, size = 0x1000, scoped, tag = 'scratch operand']
  #allocation4 [shape = 'f32[5,2]{1,0:T(8,128)}', space=vmem, size = 0x1000, scoped, tag = 'scratch operand']
  #allocation5 [shape = 'f32[5,2]{1,0:T(8,128)}', space=vmem, size = 0x1000, scoped, tag = 'scratch operand']
  #allocation6 [shape = 'f32[5,1]{1,0:T(8,128)}', space=vmem, size = 0x1000, scoped, tag = 'scratch operand']
  %s0 = inlined_call_operand.vmem [shape: bf16[2,3,256], index: 0, kind: input, shape index: {}]
  %s1 = inlined_call_operand.vmem [shape: bf16[15,3], index: 1, kind: input, shape index: {}]
  %s2 = inlined_call_operand.vmem [shape: f32[15,1], index: 2, kind: input, shape index: {}]
  %s3 = inlined_call_operand.vmem [shape: bf16[2,5,15], index: 3, kind: input, shape index: {}]
  %s4 = inlined_call_operand.vmem [shape: f32[2,5,1], index: 4, kind: output, shape index: {}]
  %s5 = sld [smem:[#allocation0]]
  $region61: #{tpu_custom_call.1} parent=0
    _
  %s7 = ssub.s32 1, %s5
  %s8 = scalar_select 0, %s7, %s5
  loop: start=0, step=1, limit=8
  $region2: #{tpu_custom_call.1} parent=0 // loop_pre_header
    _
  $region3: #{tpu_custom_call.1} parent=0 // loop_header
    %s10 = sphi 0, %s14
    %p11 = scmp.ge.s32.totalorder %s10, 8
    %s17 = sphi 0, %s36
    %s18 = sphi 0, %s32
    %s19 = sphi 0, %s28
    %s20 = sphi 0, %s17
    %s21 = sphi 0, %s18
    %s22 = sphi 0, %s19
    %s23 = sphi 0, %s20
    %s24 = sphi 0, %s21
    %s25 = sphi 0, %s22
    %s41 = sphi 0, %s43
    %s44 = sphi 0, %s41
    %s45 = sphi 0, %s44
    %s61 = sphi 0, %s45
    %s65 = sphi 0, %s65
    %s67 = sphi 0, %s65
    %s68 = sphi 0, %s67
    %s82 = sphi 0, %s68
    %s86 = sphi 0, %s86
    %s88 = sphi 0, %s86
    %s89 = sphi 0, %s88
    %s103 = sphi 0, %s89
    %s107 = sphi 0, %s107
    %s109 = sphi 0, %s107
    %s110 = sphi 0, %s109
    %s124 = sphi 0, %s110
    %s130 = sphi 0, %s132
    %s133 = sphi 0, %s130
    %s134 = sphi 0, %s133
    %s150 = sphi 0, %s134
  $region4: #{tpu_custom_call.1} parent=0 // loop_header_branch
    %13 = sbr.rel (%p11) target = $region8
  $region5: #{tpu_custom_call.1} parent=0 // loop_body
    %s15 = ssub.s32 %s10, 1
    %s16 = ssub.s32 %s10, 2
    %s26 = sadd.s32 1, %s19
    %p27 = scmp.ge.s32.totalorder %s26, 1
    %s28 = scalar_select %p27, 0, %s26
    %s29 = sadd.s32 1, %s18
    %s30 = scalar_select %p27, %s29, %s18
    %p31 = scmp.ge.s32.totalorder %s30, 3
    %s32 = scalar_select %p31, 0, %s30
    %s33 = sadd.s32 1, %s17
    %s34 = scalar_select %p31, %s33, %s17
    %p35 = scmp.ge.s32.totalorder %s34, 2
    %s36 = scalar_select %p35, 0, %s34
    %s37 = ssub.s32 %s17, %s36
    %s38 = ssub.s32 %s19, %s28
    %s39 = sor.u32 %s37, %s38
    %p40 = scmp.eq.s32.totalorder %s39, 0
    %s42 = sadd.s32 %s41, 1
    %s43 = scalar_select %p40, %s41, %s42
    %p46 = pneg %p40
    %p47 = scmp.eq.s32.totalorder %s10, 5
    %p48 = por %p46, %p47
    %p49 = scmp.ne.s32.totalorder %s41, %s44
    %p50 = scmp.eq.s32.totalorder %s10, 0
    %p51 = por %p49, %p50
    %p52 = scmp.ne.s32.totalorder %s41, %s44
    %p53 = scmp.eq.s32.totalorder %s15, 5
    %p54 = por %p52, %p53
    %p55 = scmp.ne.s32.totalorder %s44, %s45
    %p56 = scmp.eq.s32.totalorder %s15, 0
    %p57 = por %p55, %p56
    %p58 = scmp.ne.s32.totalorder %s44, %s45
    %p59 = scmp.eq.s32.totalorder %s16, 5
    %p60 = por %p58, %p59
    %p62 = scmp.ne.s32.totalorder %s45, %s61
    %p63 = scmp.eq.s32.totalorder %s16, 0
    %p64 = por %p62, %p63
    %s66 = sadd.s32 %s65, 1
    %p69 = scmp.eq.s32.totalorder %s10, 5
    %p70 = scmp.ne.s32.totalorder %s65, %s67
    %p71 = scmp.eq.s32.totalorder %s10, 0
    %p72 = por %p70, %p71
    %p73 = scmp.ne.s32.totalorder %s65, %s67
    %p74 = scmp.eq.s32.totalorder %s15, 5
    %p75 = por %p73, %p74
    %p76 = scmp.ne.s32.totalorder %s67, %s68
    %p77 = scmp.eq.s32.totalorder %s15, 0
    %p78 = por %p76, %p77
    %p79 = scmp.ne.s32.totalorder %s67, %s68
    %p80 = scmp.eq.s32.totalorder %s16, 5
    %p81 = por %p79, %p80
    %p83 = scmp.ne.s32.totalorder %s68, %s82
    %p84 = scmp.eq.s32.totalorder %s16, 0
    %p85 = por %p83, %p84
    %s87 = sadd.s32 %s86, 1
    %p90 = scmp.eq.s32.totalorder %s10, 5
    %p91 = scmp.ne.s32.totalorder %s86, %s88
    %p92 = scmp.eq.s32.totalorder %s10, 0
    %p93 = por %p91, %p92
    %p94 = scmp.ne.s32.totalorder %s86, %s88
    %p95 = scmp.eq.s32.totalorder %s15, 5
    %p96 = por %p94, %p95
    %p97 = scmp.ne.s32.totalorder %s88, %s89
    %p98 = scmp.eq.s32.totalorder %s15, 0
    %p99 = por %p97, %p98
    %p100 = scmp.ne.s32.totalorder %s88, %s89
    %p101 = scmp.eq.s32.totalorder %s16, 5
    %p102 = por %p100, %p101
    %p104 = scmp.ne.s32.totalorder %s89, %s103
    %p105 = scmp.eq.s32.totalorder %s16, 0
    %p106 = por %p104, %p105
    %s108 = sadd.s32 %s107, 1
    %p111 = scmp.eq.s32.totalorder %s10, 5
    %p112 = scmp.ne.s32.totalorder %s107, %s109
    %p113 = scmp.eq.s32.totalorder %s10, 0
    %p114 = por %p112, %p113
    %p115 = scmp.ne.s32.totalorder %s107, %s109
    %p116 = scmp.eq.s32.totalorder %s15, 5
    %p117 = por %p115, %p116
    %p118 = scmp.ne.s32.totalorder %s109, %s110
    %p119 = scmp.eq.s32.totalorder %s15, 0
    %p120 = por %p118, %p119
    %p121 = scmp.ne.s32.totalorder %s109, %s110
    %p122 = scmp.eq.s32.totalorder %s16, 5
    %p123 = por %p121, %p122
    %p125 = scmp.ne.s32.totalorder %s110, %s124
    %p126 = scmp.eq.s32.totalorder %s16, 0
    %p127 = por %p125, %p126
    %s128 = ssub.s32 %s17, %s36
    %p129 = scmp.eq.s32.totalorder %s128, 0
    %s131 = sadd.s32 %s130, 1
    %s132 = scalar_select %p129, %s130, %s131
    %p135 = pneg %p129
    %p136 = scmp.eq.s32.totalorder %s10, 5
    %p137 = por %p135, %p136
    %p138 = scmp.ne.s32.totalorder %s130, %s133
    %p139 = scmp.eq.s32.totalorder %s10, 0
    %p140 = por %p138, %p139
    %p141 = scmp.ne.s32.totalorder %s130, %s133
    %p142 = scmp.eq.s32.totalorder %s15, 5
    %p143 = por %p141, %p142
    %p144 = scmp.ne.s32.totalorder %s133, %s134
    %p145 = scmp.eq.s32.totalorder %s15, 0
    %p146 = por %p144, %p145
    %p147 = scmp.ne.s32.totalorder %s133, %s134
    %p148 = scmp.eq.s32.totalorder %s16, 5
    %p149 = por %p147, %p148
    %p151 = scmp.ne.s32.totalorder %s134, %s150
    %p152 = scmp.eq.s32.totalorder %s16, 0
    %p153 = por %p151, %p152
    %p154 = scmp.le.s32.totalorder 1, %s10
    %p155 = scmp.lt.s32.totalorder %s10, 7
    %p156 = pnand %p154, %p155
    %p157 = pneg %p156
    // Predicated region
    $region9: #{tpu_custom_call.1} parent=5 // pred_check
      _
    $region10: #{tpu_custom_call.1} parent=5 // pred_check_branch
      %159 = sbr.rel (%p156) target = $region12
    $region11: #{tpu_custom_call.1} parent=5 // pred_region
      %s160 = ssub.s32 %s10, 1
      // Predicated region
      $region13: #{tpu_custom_call.1} parent=11 // pred_check
        %p161 = pneg %p78
      $region14: #{tpu_custom_call.1} parent=11 // pred_check_branch
        %163 = sbr.rel (%p161) target = $region16
      $region15: #{tpu_custom_call.1} parent=11 // pred_region
        _
      $region16: #{tpu_custom_call.1} parent=11 // pred_fallthru
        _
      // Predicated region
      $region17: #{tpu_custom_call.1} parent=11 // pred_check
        %p164 = pneg %p99
      $region18: #{tpu_custom_call.1} parent=11 // pred_check_branch
        %166 = sbr.rel (%p164) target = $region20
      $region19: #{tpu_custom_call.1} parent=11 // pred_region
        _
      $region20: #{tpu_custom_call.1} parent=11 // pred_fallthru
        _
      // Predicated region
      $region21: #{tpu_custom_call.1} parent=11 // pred_check
        %p167 = pneg %p120
      $region22: #{tpu_custom_call.1} parent=11 // pred_check_branch
        %169 = sbr.rel (%p167) target = $region24
      $region23: #{tpu_custom_call.1} parent=11 // pred_region
        _
      $region24: #{tpu_custom_call.1} parent=11 // pred_fallthru
        _
    $region12: #{tpu_custom_call.1} parent=5 // pred_fallthru
      _
    %p170 = scmp.lt.s32.totalorder %s10, 6
    // Predicated region
    $region25: #{tpu_custom_call.1} parent=5 // pred_check
      %p171 = pneg %p170
    $region26: #{tpu_custom_call.1} parent=5 // pred_check_branch
      %173 = sbr.rel (%p171) target = $region28
    $region27: #{tpu_custom_call.1} parent=5 // pred_region
      // Predicated region
      $region29: #{tpu_custom_call.1} parent=27 // pred_check
        %p174 = pneg %p51
      $region30: #{tpu_custom_call.1} parent=27 // pred_check_branch
        %176 = sbr.rel (%p174) target = $region32
      $region31: #{tpu_custom_call.1} parent=27 // pred_region
        %s177 = smul.u32 2, %s19
        %p178 = scmp.lt.s32.totalorder %s17, 1
        %s179 = scalar_select %p178, %s17, 1
        %p180 = scmp.lt.s32.totalorder %s177, 1
        %s181 = scalar_select %p180, %s177, 1
        %s182 = smul.addr %s179, 2
        %s183 = sadd.s32 %s181, %s182
        %s184 = smul.addr %s183, 2
        %s185 = scalar_lea.vmem %s0, %s184
        %s186 = smul.u32 2, %s19
      $region32: #{tpu_custom_call.1} parent=27 // pred_fallthru
        _
    $region28: #{tpu_custom_call.1} parent=5 // pred_fallthru
      _
    %p187 = scmp.le.s32.totalorder 1, %s10
    %p188 = scmp.lt.s32.totalorder %s10, 7
    %p189 = pnand %p187, %p188
    %p190 = pneg %p189
    // Predicated region
    $region33: #{tpu_custom_call.1} parent=5 // pred_check
      _
    $region34: #{tpu_custom_call.1} parent=5 // pred_check_branch
      %192 = sbr.rel (%p189) target = $region36
    $region35: #{tpu_custom_call.1} parent=5 // pred_region
      %s193 = ssub.s32 %s10, 1
      %s194 = smul.u32 2, %s22
      %p195 = scmp.lt.s32.totalorder %s20, 1
      %s196 = scalar_select %p195, %s20, 1
      %p197 = scmp.lt.s32.totalorder %s194, 1
      %s198 = scalar_select %p197, %s194, 1
      %s199 = smul.addr %s196, 2
      %s200 = sadd.s32 %s198, %s199
      %s201 = smul.addr %s200, 2
      %s202 = scalar_lea.vmem %s0, %s201
      %p203 = pneg %p57
      %p204 = pneg %p54
      %p205 = pneg %p78
      %p206 = pneg %p75
      %p207 = pneg %p99
      %p208 = pneg %p96
      %p209 = pneg %p120
      %p210 = pneg %p117
      %p211 = pneg %p146
      %p212 = pneg %p143
      %p213 = scmp.lt.s32.totalorder %s20, 1
      %s214 = scalar_select %p213, %s20, 1
      %s215 = smul.addr %s214, 8
      %s216 = scalar_lea.vmem %s4, %s215
      %s217 = smul.u32 2, %s22
      %p218 = scmp.lt.s32.totalorder %s20, 1
      %s219 = scalar_select %p218, %s20, 1
      %p220 = scmp.lt.s32.totalorder %s217, 1
      %s221 = scalar_select %p220, %s217, 1
      %s222 = smul.addr %s219, 2
      %s223 = sadd.s32 %s221, %s222
      %s224 = smul.addr %s223, 2
      %s225 = scalar_lea.vmem %s0, %s224
      %s226 = smul.u32 2, %s22
      %p227 = scmp.lt.s32.totalorder %s20, 1
      %s228 = scalar_select %p227, %s20, 1
      %s229 = smul.addr %s228, 8
      %s230 = scalar_lea.vmem %s4, %s229
      %p232 = scmp.eq.s32.totalorder %s21, 0
      %p233 = scmp.eq.s32.totalorder %s22, 0
      %p234 = pnand %p232, %p233
      %p235 = pneg %p234
      // Predicated region
      $region37: #{tpu_custom_call.1} parent=35 // pred_check
        _
      $region38: #{tpu_custom_call.1} parent=35 // pred_check_branch
        %237 = sbr.rel (%p234) target = $region40
      $region39: #{tpu_custom_call.1} parent=35 // pred_region
        %vm238 = vcmask 4096
        %239 = vst.msk [vmem:[#allocation2] sm:$0x1f] %vm238, 0.0
        %240 = vst.msk [vmem:[#allocation6] sm:$0x1f] %vm238, 0.0
      $region40: #{tpu_custom_call.1} parent=35 // pred_fallthru
        _
      // Predicated region
      $region41: #{tpu_custom_call.1} parent=35 // pred_check
        %p241 = pneg %p233
      $region42: #{tpu_custom_call.1} parent=35 // pred_check_branch
        %243 = sbr.rel (%p241) target = $region44
      $region43: #{tpu_custom_call.1} parent=35 // pred_region
        %vm244 = vcmask 4096
        %245 = vst.msk [vmem:[#allocation3] sm:$0x1f] %vm244, 0.0
        %vm246 = vcmask 12288
        %247 = vst.msk [vmem:[#allocation4] sm:$0x1f] %vm246, 0.0
        %248 = vst.msk [vmem:[#allocation5] sm:$0x1f] %vm246, 0.0
      $region44: #{tpu_custom_call.1} parent=35 // pred_fallthru
        _
      %v249 = vld [vmem:[%s1] sm:$0xf]
      %v250 = vld [vmem:[%s1 + $0x4] sm:$0xf]
      %v251 = vld [vmem:[%s2] sm:$0xff]
      %v252 = vld [vmem:[%s2 + $0x8] sm:$0x7f]
      %v253 = vld [vmem:[%s3] sm:$0x7]
      %s254 = scalar_lea.vmem %s3, 4
      %v255 = vld [vmem:[%s254] sm:$0x7]
      %v256 = vld [vmem:[#allocation6] sm:$0x1f]
      %v257 = vld [vmem:[%s225] sm:$0xf]
      %v258 = vunpack.c.l.bf16 %v257
      %v259 = vadd.f32 %v258, 0.003921569
      %v260 = vlog2.pop %v259
      %v261 = vmul.f32 %v260, 0.6931472
      %v262 = vsub.f32 0.0, %v261
      %v264 = vcombine.high %v262, %v262
      %v266 = vpack.c.bf16 %v262, %v262
      %v267 = vpack.c.bf16 %v264, %v264
      %269 = vset.pattern.permute.xlu0 0
      %270 = vperm.xlu0 %269, %v251
      %v271 = vpop.permute.xlu0 %270
      %274 = vset.pattern.permute.xlu0 0
      %275 = vperm.xlu0 %274, %v252
      %v276 = vpop.permute.xlu0 %275
      %v280 = vunpack.c.l.b16 %v249
      %v281 = vunpack.c.l.b16 %v250
      %v282 = vpack.c.b16 %v281, %v280
      %vm283 = vcmask 23552
      %v285 = vsel %vm283, %v282, 0
      %vm287 = vcmask 1040384
      %vm288 = vcmask 1041408
      %v289 = vsel %vm287, 4294967295, 65535
      %v290 = vsel %vm288, %v289, 0
      %v292 = vand.u32 %v266, %v290
      %v295 = vand.u32 %v267, %v290
      %297 = vmatprep.subr.bf16.mxu0 0
      %298 = vmatpush1.bf16.msra.mxu0 0
      %299 = vmatprep.subr.bf16.mxu0 0
      %300 = vmatpush1.bf16.msra.mxu0 0
      %301 = vmatprep.subr.bf16.mxu0 0
      %302 = vmatpush1.bf16.msra.mxu0 0
      %303 = vmatprep.subr.bf16.mxu0 0
      %304 = vmatpush1.bf16.msra.mxu0 0
      %305 = vmatprep.subr.bf16.mxu0 0
      %306 = vmatpush1.bf16.msra.mxu0 0
      %307 = vmatprep.subr.bf16.mxu0 0
      %308 = vmatpush1.bf16.msra.mxu0 0
      %309 = vmatprep.subr.bf16.mxu0 0
      %310 = vmatpush1.bf16.msra.mxu0 0
      %311 = vmatprep.subr.bf16.mxu0 %v295
      %312 = vmatpush1.bf16.msra.mxu0 %v292
      %313 = vmatprep.subr.bf16.mxu0 0
      %314 = vmatpush2.bf16.msra.mxu0 0
      %315 = vmatprep.subr.bf16.mxu0 0
      %316 = vmatpush2.bf16.msra.mxu0 0
      %317 = vmatprep.subr.bf16.mxu0 0
      %318 = vmatpush2.bf16.msra.mxu0 0
      %319 = vmatprep.subr.bf16.mxu0 0
      %320 = vmatpush2.bf16.msra.mxu0 0
      %321 = vmatprep.subr.bf16.mxu0 0
      %322 = vmatpush2.bf16.msra.mxu0 0
      %323 = vmatprep.subr.bf16.mxu0 0
      %324 = vmatpush2.bf16.msra.mxu0 0
      %325 = vmatprep.subr.bf16.mxu0 0
      %326 = vmatpush2.bf16.msra.mxu0 0
      %327 = vmatprep.subr.bf16.mxu0 0
      %328 = vmatpush2.bf16.msra.mxu0 0
      %329 = vmatprep.mubr.bf16.mxu0 0
      %330 = vmatmul.mubr.bf16.gmra.mxu0 %v285
      %v331 = vpop.f32.mrf.mxu0
      %v332 = vadd.f32 %v271, %v331
      %v333 = vpop.f32.mrf.mxu0
      %v334 = vadd.f32 %v271, %v333
      %v335 = vpop.f32.mrf.mxu0
      %v336 = vadd.f32 %v276, %v335
      %v337 = vpop.f32.mrf.mxu0
      %v338 = vadd.f32 %v276, %v337
      %339 = vdwg.mxu0
      %vm340 = vcmp.ge.f32.partialorder %v332, 0.0
      %vm341 = vcmp.ge.f32.partialorder %v334, 0.0
      %vm342 = vcmp.ge.f32.partialorder %v336, 0.0
      %vm343 = vcmp.ge.f32.partialorder %v338, 0.0
      %v344 = vmul.f32 %v332, 0.01
      %v345 = vmul.f32 %v334, 0.01
      %v346 = vmul.f32 %v336, 0.01
      %v347 = vmul.f32 %v338, 0.01
      %v348 = vsel %vm340, %v332, %v344
      %v349 = vsel %vm341, %v334, %v345
      %v350 = vsel %vm342, %v336, %v346
      %v351 = vsel %vm343, %v338, %v347
      %v352 = vpack.c.bf16 %v350, %v348
      %v353 = vpack.c.bf16 %v351, %v349
      %vm354 = vcmask 121856
      %v356 = vsel %vm354, %v253, 0
      %vm358 = vcmask 1046528
      %vm359 = vcmask 1047552
      %v360 = vsel %vm358, 4294967295, 65535
      %v361 = vsel %vm359, %v360, 0
      %v363 = vand.u32 %v352, %v361
      %v366 = vand.u32 %v353, %v361
      %368 = vmatprep.subr.bf16.mxu0 0
      %369 = vmatpush1.bf16.msra.mxu0 0
      %370 = vmatprep.subr.bf16.mxu0 0
      %371 = vmatpush1.bf16.msra.mxu0 0
      %372 = vmatprep.subr.bf16.mxu0 0
      %373 = vmatpush1.bf16.msra.mxu0 0
      %374 = vmatprep.subr.bf16.mxu0 0
      %375 = vmatpush1.bf16.msra.mxu0 0
      %376 = vmatprep.subr.bf16.mxu0 0
      %377 = vmatpush1.bf16.msra.mxu0 0
      %378 = vmatprep.subr.bf16.mxu0 0
      %379 = vmatpush1.bf16.msra.mxu0 0
      %380 = vmatprep.subr.bf16.mxu0 0
      %381 = vmatpush1.bf16.msra.mxu0 0
      %382 = vmatprep.subr.bf16.mxu0 %v366
      %383 = vmatpush1.bf16.msra.mxu0 %v363
      %384 = vmatprep.subr.bf16.mxu0 0
      %385 = vmatpush2.bf16.msra.mxu0 0
      %386 = vmatprep.subr.bf16.mxu0 0
      %387 = vmatpush2.bf16.msra.mxu0 0
      %388 = vmatprep.subr.bf16.mxu0 0
      %389 = vmatpush2.bf16.msra.mxu0 0
      %390 = vmatprep.subr.bf16.mxu0 0
      %391 = vmatpush2.bf16.msra.mxu0 0
      %392 = vmatprep.subr.bf16.mxu0 0
      %393 = vmatpush2.bf16.msra.mxu0 0
      %394 = vmatprep.subr.bf16.mxu0 0
      %395 = vmatpush2.bf16.msra.mxu0 0
      %396 = vmatprep.subr.bf16.mxu0 0
      %397 = vmatpush2.bf16.msra.mxu0 0
      %398 = vmatprep.subr.bf16.mxu0 0
      %399 = vmatpush2.bf16.msra.mxu0 0
      %400 = vmatprep.mubr.bf16.mxu0 0
      %401 = vmatmul.mubr.bf16.gmra.mxu0 %v356
      %v402 = vpop.f32.mrf.mxu0
      %v403 = vadd.f32 0.0, %v402
      %v404 = vpop.f32.mrf.mxu0
      %v405 = vadd.f32 0.0, %v404
      %v406 = vpop.f32.mrf.mxu0
      %v407 = vpop.f32.mrf.mxu0
      %408 = vdwg.mxu0
      %vm409 = vcmp.ge.f32.partialorder %v403, 0.0
      %vm410 = vcmp.ge.f32.partialorder %v405, 0.0
      %v411 = vmul.f32 %v403, 0.01
      %v412 = vmul.f32 %v405, 0.01
      %v413 = vsel %vm409, %v403, %v411
      %v414 = vsel %vm410, %v405, %v412
      %v416 = vsel %vm354, %v255, 0
      %418 = vmatprep.subr.bf16.mxu0 0
      %419 = vmatpush1.bf16.msra.mxu0 0
      %420 = vmatprep.subr.bf16.mxu0 0
      %421 = vmatpush1.bf16.msra.mxu0 0
      %422 = vmatprep.subr.bf16.mxu0 0
      %423 = vmatpush1.bf16.msra.mxu0 0
      %424 = vmatprep.subr.bf16.mxu0 0
      %425 = vmatpush1.bf16.msra.mxu0 0
      %426 = vmatprep.subr.bf16.mxu0 0
      %427 = vmatpush1.bf16.msra.mxu0 0
      %428 = vmatprep.subr.bf16.mxu0 0
      %429 = vmatpush1.bf16.msra.mxu0 0
      %430 = vmatprep.subr.bf16.mxu0 0
      %431 = vmatpush1.bf16.msra.mxu0 0
      %432 = vmatprep.subr.bf16.mxu0 %v366
      %433 = vmatpush1.bf16.msra.mxu0 %v363
      %434 = vmatprep.subr.bf16.mxu0 0
      %435 = vmatpush2.bf16.msra.mxu0 0
      %436 = vmatprep.subr.bf16.mxu0 0
      %437 = vmatpush2.bf16.msra.mxu0 0
      %438 = vmatprep.subr.bf16.mxu0 0
      %439 = vmatpush2.bf16.msra.mxu0 0
      %440 = vmatprep.subr.bf16.mxu0 0
      %441 = vmatpush2.bf16.msra.mxu0 0
      %442 = vmatprep.subr.bf16.mxu0 0
      %443 = vmatpush2.bf16.msra.mxu0 0
      %444 = vmatprep.subr.bf16.mxu0 0
      %445 = vmatpush2.bf16.msra.mxu0 0
      %446 = vmatprep.subr.bf16.mxu0 0
      %447 = vmatpush2.bf16.msra.mxu0 0
      %448 = vmatprep.subr.bf16.mxu0 0
      %449 = vmatpush2.bf16.msra.mxu0 0
      %450 = vmatprep.mubr.bf16.mxu0 0
      %451 = vmatmul.mubr.bf16.gmra.mxu0 %v416
      %v452 = vpop.f32.mrf.mxu0
      %v453 = vadd.f32 0.0, %v452
      %v454 = vpop.f32.mrf.mxu0
      %v455 = vadd.f32 0.0, %v454
      %v456 = vpop.f32.mrf.mxu0
      %v457 = vpop.f32.mrf.mxu0
      %458 = vdwg.mxu0
      %vm459 = vcmp.ge.f32.partialorder %v453, 0.0
      %vm460 = vcmp.ge.f32.partialorder %v455, 0.0
      %v461 = vmul.f32 %v453, 0.01
      %v462 = vmul.f32 %v455, 0.01
      %v463 = vsel %vm459, %v453, %v461
      %v464 = vsel %vm460, %v455, %v462
      %466 = vset.pattern.permute.xlu0 0
      %467 = vperm.xlu0 %466, %v256
      %v468 = vpop.permute.xlu0 %467
      %v470 = vmul.f32 %v468, %v413
      %v471 = vmul.f32 %v468, %v414
      %vm472 = vcmask 1044480
      %v473 = vsel %vm472, %v470, 0.0
      %v474 = vrot.slane %v473, 4
      %v475 = vadd.f32 %v473, %v474
      %v476 = vrot.slane %v475, 2
      %v477 = vadd.f32 %v475, %v476
      %v478 = vrot.slane %v477, 1
      %v479 = vadd.f32 %v477, %v478
      %v480 = vsel %vm472, %v471, 0.0
      %v481 = vrot.slane %v480, 4
      %v482 = vadd.f32 %v480, %v481
      %v483 = vrot.slane %v482, 2
      %v484 = vadd.f32 %v482, %v483
      %v485 = vrot.slane %v484, 1
      %v486 = vadd.f32 %v484, %v485
      %v487 = vadd.f32 %v479, %v413
      %v488 = vadd.f32 %v486, %v414
      %v489 = vadd.f32 %v487, 1e-05
      %v490 = vadd.f32 %v488, 1e-05
      %v491 = vmul.f32 %v489, %v489
      %v492 = vmul.f32 %v490, %v490
      %v493 = vand.u32 2147483647, %v489
      %v494 = vand.u32 2147483647, %v490
      %v495 = vld [vmem:[#allocation4] sm:$0x1f]
      %v496 = vsel %vm472, %v491, 0.0
      %v497 = vsel %vm472, %v492, 0.0
      %v498 = vadd.f32 %v496, %v497
      %499 = vadd.xlane.f32.xlu0 %v498
      %v500 = vpop.xlane.xlu0 %499
      %v501 = vadd.f32 %v495, %v500
      %vm502 = vcmask 4096
      %503 = vst.msk [vmem:[#allocation4] sm:$0x1f] %vm502, %v501
      %v504 = vld [vmem:[#allocation5] sm:$0x1f]
      %v505 = vsel %vm472, %v493, 0.0
      %v506 = vsel %vm472, %v494, 0.0
      %v507 = vadd.f32 %v505, %v506
      %508 = vadd.xlane.f32.xlu0 %v507
      %v509 = vpop.xlane.xlu0 %508
      %v510 = vadd.f32 %v504, %v509
      %511 = vst.msk [vmem:[#allocation5] sm:$0x1f] %vm502, %v510
      %v512 = vmul.f32 %v468, %v463
      %v513 = vmul.f32 %v468, %v464
      %v514 = vsel %vm472, %v512, 0.0
      %v515 = vrot.slane %v514, 4
      %v516 = vadd.f32 %v514, %v515
      %v517 = vrot.slane %v516, 2
      %v518 = vadd.f32 %v516, %v517
      %v519 = vrot.slane %v518, 1
      %v520 = vadd.f32 %v518, %v519
      %v521 = vsel %vm472, %v513, 0.0
      %v522 = vrot.slane %v521, 4
      %v523 = vadd.f32 %v521, %v522
      %v524 = vrot.slane %v523, 2
      %v525 = vadd.f32 %v523, %v524
      %v526 = vrot.slane %v525, 1
      %v527 = vadd.f32 %v525, %v526
      %v528 = vadd.f32 %v520, %v463
      %v529 = vadd.f32 %v527, %v464
      %v530 = vadd.f32 %v528, 1e-05
      %v531 = vadd.f32 %v529, 1e-05
      %v532 = vmul.f32 %v530, %v530
      %v533 = vmul.f32 %v531, %v531
      %v534 = vand.u32 2147483647, %v530
      %v535 = vand.u32 2147483647, %v531
      %v536 = vld [vmem:[#allocation4] sm:$0x1f]
      %v537 = vsel %vm472, %v532, 0.0
      %v538 = vsel %vm472, %v533, 0.0
      %v539 = vadd.f32 %v537, %v538
      %540 = vadd.xlane.f32.xlu0 %v539
      %v541 = vpop.xlane.xlu0 %540
      %v542 = vadd.f32 %v536, %v541
      %vm543 = vcmask 12296
      %544 = vst.msk [vmem:[#allocation4] sm:$0x1f] %vm543, %v542
      %v545 = vld [vmem:[#allocation5] sm:$0x1f]
      %v546 = vsel %vm472, %v534, 0.0
      %v547 = vsel %vm472, %v535, 0.0
      %v548 = vadd.f32 %v546, %v547
      %549 = vadd.xlane.f32.xlu0 %v548
      %v550 = vpop.xlane.xlu0 %549
      %v551 = vadd.f32 %v545, %v550
      %552 = vst.msk [vmem:[#allocation5] sm:$0x1f] %vm543, %v551
      %v553 = vadd.f32 %v491, %v532
      %v554 = vadd.f32 %v492, %v533
      %v555 = vadd.f32 %v493, %v534
      %v556 = vadd.f32 %v494, %v535
      %v557 = vrsqrt.pop %v553
      %v558 = vmul.f32 %v553, %v557
      %vm559 = vcmp.eq.f32.partialorder %v553, inf
      %v560 = vsel %vm559, %v553, %v558
      %vm561 = vcmp.eq.f32.partialorder %v553, 0.0
      %v562 = vand.u32 %v553, 2147483648
      %v563 = vsel %vm561, %v562, %v560
      %v564 = vrsqrt.pop %v554
      %v565 = vmul.f32 %v554, %v564
      %vm566 = vcmp.eq.f32.partialorder %v554, inf
      %v567 = vsel %vm566, %v554, %v565
      %vm568 = vcmp.eq.f32.partialorder %v554, 0.0
      %v569 = vand.u32 %v554, 2147483648
      %v570 = vsel %vm568, %v569, %v567
      %v571 = vadd.f32 %v563, 1e-05
      %v572 = vadd.f32 %v570, 1e-05
      %v573 = vrcp.pop %v571
      %v574 = vrcp.pop %v572
      %v575 = vmul.f32 %v555, %v573
      %v576 = vmul.f32 %v556, %v574
      %v577 = vsub.f32 1.4142135, %v575
      %v578 = vsub.f32 1.4142135, %v576
      %v579 = vmul.f32 %v577, 2.4142137
      %v580 = vmul.f32 %v578, 2.4142137
      %v581 = vld [vmem:[#allocation3] sm:$0x1f]
      %v582 = vsel %vm472, %v579, 0.0
      %v583 = vsel %vm472, %v580, 0.0
      %v584 = vadd.f32 %v582, %v583
      %585 = vadd.xlane.f32.xlu0 %v584
      %v586 = vpop.xlane.xlu0 %585
      %v587 = vadd.f32 %v581, %v586
      %588 = vst.msk [vmem:[#allocation3] sm:$0x1f] %vm502, %v587
      // Predicated region
      $region45: #{tpu_custom_call.1} parent=35 // pred_check
        %p589 = pneg %p233
      $region46: #{tpu_custom_call.1} parent=35 // pred_check_branch
        %591 = sbr.rel (%p589) target = $region48
      $region47: #{tpu_custom_call.1} parent=35 // pred_region
        %v592 = vld [vmem:[#allocation3] sm:$0x1f]
        %v593 = vmul.f32 %v592, 0.00390625
        %v594 = vld [vmem:[#allocation4] sm:$0x1f]
        %v595 = vrsqrt.pop %v594
        %v596 = vmul.f32 %v594, %v595
        %vm597 = vcmp.eq.f32.partialorder %v594, inf
        %v598 = vsel %vm597, %v594, %v596
        %vm599 = vcmp.eq.f32.partialorder %v594, 0.0
        %v600 = vand.u32 %v594, 2147483648
        %v601 = vsel %vm599, %v600, %v598
        %v602 = vadd.f32 %v601, 1e-05
        %v603 = vld [vmem:[#allocation5] sm:$0x1f]
        %v604 = vrcp.pop %v602
        %v605 = vmul.f32 %v603, %v604
        %v606 = vsub.f32 16.0, %v605
        %v607 = vmul.f32 %v606, 0.06666667
        %vm608 = vcmask 12288
        %v609 = vsel %vm608, %v607, 0.0
        %610 = vadd.xlane.f32.xlu0 %v609
        %v611 = vpop.xlane.xlu0 %610
        %v612 = vmul.f32 %v611, 0.5
        %v613 = vld [vmem:[#allocation2] sm:$0x1f]
        %v614 = vadd.f32 %v613, %v593
        %v615 = vadd.f32 %v614, %v612
        %616 = vst.msk [vmem:[#allocation2] sm:$0x1f] %vm502, %v615
        %v617 = vsel %vm502, %v615, -inf
        %v618 = vrot.slane %v617, 4
        %v619 = vmax.f32 %v617, %v618
        %v620 = vrot.slane %v619, 2
        %v621 = vmax.f32 %v619, %v620
        %v622 = vrot.slane %v621, 1
        %v623 = vmax.f32 %v621, %v622
        %v624 = vsub.f32 %v615, %v623
        %v625 = vmul.f32 %v624, 1.442695
        %v626 = vpow.pop %v625
        %v627 = vsel %vm502, %v626, 0.0
        %v628 = vrot.slane %v627, 4
        %v629 = vadd.f32 %v627, %v628
        %v630 = vrot.slane %v629, 2
        %v631 = vadd.f32 %v629, %v630
        %v632 = vrot.slane %v631, 1
        %v633 = vadd.f32 %v631, %v632
        %v634 = vrcp.pop %v633
        %v635 = vmul.f32 %v626, %v634
        %636 = vst.msk [vmem:[#allocation6] sm:$0x1f] %vm502, %v635
        %637 = vst.msk [vmem:[%s230] sm:$0x1f] %vm502, %v635
      $region48: #{tpu_custom_call.1} parent=35 // pred_fallthru
        _
      %p638 = scmp.lt.s32.totalorder %s20, 1
      %s639 = scalar_select %p638, %s20, 1
      %s640 = smul.addr %s639, 8
      %s641 = scalar_lea.vmem %s4, %s640
      // Predicated region
      $region49: #{tpu_custom_call.1} parent=35 // pred_check
        %p642 = pneg %p143
      $region50: #{tpu_custom_call.1} parent=35 // pred_check_branch
        %644 = sbr.rel (%p642) target = $region52
      $region51: #{tpu_custom_call.1} parent=35 // pred_region
        _
      $region52: #{tpu_custom_call.1} parent=35 // pred_fallthru
        _
    $region36: #{tpu_custom_call.1} parent=5 // pred_fallthru
      _
    %p645 = scmp.le.s32.totalorder 2, %s10
    // Predicated region
    $region53: #{tpu_custom_call.1} parent=5 // pred_check
      %p646 = pneg %p645
    $region54: #{tpu_custom_call.1} parent=5 // pred_check_branch
      %648 = sbr.rel (%p646) target = $region56
    $region55: #{tpu_custom_call.1} parent=5 // pred_region
      %s649 = ssub.s32 %s10, 2
      // Predicated region
      $region57: #{tpu_custom_call.1} parent=55 // pred_check
        %p650 = pneg %p149
      $region58: #{tpu_custom_call.1} parent=55 // pred_check_branch
        %652 = sbr.rel (%p650) target = $region60
      $region59: #{tpu_custom_call.1} parent=55 // pred_region
        %p653 = scmp.lt.s32.totalorder %s23, 1
        %s654 = scalar_select %p653, %s23, 1
        %s655 = smul.addr %s654, 8
        %s656 = scalar_lea.vmem %s4, %s655
      $region60: #{tpu_custom_call.1} parent=55 // pred_fallthru
        _
    $region56: #{tpu_custom_call.1} parent=5 // pred_fallthru
      _
  $region6: #{tpu_custom_call.1} parent=0 // loop_footer
    %s14 = sadd.s32 1, %s10
  $region7: #{tpu_custom_call.1} parent=0 // loop_footer_branch
    %9 = sbr.rel target = $region3
  $region8: #{tpu_custom_call.1} parent=0 // loop_exit
    _

</llo_original>
